<compile_context>
chip_gen: v5e
topology: v5e:2x2
jax: 0.10.0
libtpu: 0.0.40
codegen_flags: <defaults>
</compile_context>

<pallas_src>
import jax
import jax.numpy as jnp
from jax import lax
from jax.experimental import pallas as pl
from jax.experimental.pallas import tpu as pltpu
import numpy as np


def lstm_fused_kernel(tok_ref, table_ref, h0_ref, c0_ref, whh_ref, wfc_ref,
                      bfc_ref, out_ref):
    """Fused gather + LSTM recurrence + FC head, one invocation.

    tok_ref   : (S*B, 1) int32  token ids, time-major then batch
    table_ref : (V, 4H)  f32    fused table = embedding @ W_ih^T + b_ih + b_hh
    h0_ref    : (B, H)   f32    initial hidden state
    c0_ref    : (B, H)   f32    initial cell state
    whh_ref   : (H, 4H)  bf16   hidden->gate weights (single-pass MXU operand)
    wfc_ref   : (H, O)   f32    final Linear weight (transposed)
    bfc_ref   : (1, O)   f32    final Linear bias
    out_ref   : (1, B, O) f32   output = fc(lstm_output[-1]).unsqueeze(0)
    """
    B = h0_ref.shape[0]
    H = h0_ref.shape[-1]
    V = table_ref.shape[0]
    SB = tok_ref.shape[0]
    S = SB // B

    # ---- In-kernel gather of per-token gate pre-activations (one MXU matmul).
    # one_hot is exactly 0/1, so onehot @ table reproduces the gathered rows
    # (f32 multi-pass MXU); fires once per call, off the serial chain.
    tok = tok_ref[...]                                               # (S*B, 1) i32
    onehot = (tok == lax.broadcasted_iota(jnp.int32, (SB, V), 1)).astype(jnp.float32)
    pre = jnp.dot(onehot, table_ref[...],
                  preferred_element_type=jnp.float32)                # (S*B, 4H)

    whh = whh_ref[...]                                               # bf16, loaded once
    # Static lane mask selecting the g-gate block (lanes [2H, 3H)).
    lane = lax.broadcasted_iota(jnp.int32, (B, 4 * H), 1)
    g_lanes = (lane >= 2 * H) & (lane < 3 * H)

    h = h0_ref[...]                                                  # f32 (B, H)
    c = c0_ref[...]                                                  # f32 (B, H)

    # Short fixed trip count -> fully unrolled (static Python loop, S = 8).
    for t in range(S):
        # Only the hidden-side matmul sits on the serial dependency chain;
        # bf16 operands + f32 accumulation = single MXU pass.
        gates = pre[t * B:(t + 1) * B, :] + jnp.dot(
            h.astype(jnp.bfloat16), whh, preferred_element_type=jnp.float32)  # (B, 4H)

        # Full-vreg activations (2 EUP pushes), then lane-select g vs i/f/o.
        sig = jax.nn.sigmoid(gates)
        tnh = jnp.tanh(gates)
        act = jnp.where(g_lanes, tnh, sig)       # [i_sig | f_sig | g_tanh | o_sig]

        # Static 32-lane block extraction -> XLU lane rotates (free slot).
        i_g = act[:, 0 * H:1 * H]
        f_g = act[:, 1 * H:2 * H]
        g_g = act[:, 2 * H:3 * H]
        o_g = act[:, 3 * H:4 * H]

        c = f_g * c + i_g * g_g                  # f32 elementwise (v5e-safe)
        h = o_g * jnp.tanh(c)

    # FC head fires once per call; f32 matmul for accuracy.
    logits = jnp.dot(h, wfc_ref[...], preferred_element_type=jnp.float32) + bfc_ref[...]
    # O=8 -> lane-sparse masked store, but it fires once per call (negligible).
    out_ref[0] = logits.astype(out_ref.dtype)


def pallas_forward(x_tokens, h0, c0, params):
    """Equivalent of LSTMSeqLabel.forward (layers=1, unidirectional, no layernorm)."""
    S, B = x_tokens.shape
    O = params["w_fc_t"].shape[-1]

    # Only glue left in the wrapper: a layout reshape of the int token ids.
    tok_flat = x_tokens.reshape(S * B, 1).astype(jnp.int32)

    vmem = pl.BlockSpec(memory_space=pltpu.MemorySpace.VMEM)
    out = pl.pallas_call(
        lstm_fused_kernel,
        out_shape=jax.ShapeDtypeStruct((1, B, O), jnp.float32),
        in_specs=[vmem] * 7,        # everything (<50 KiB) resident in VMEM
        out_specs=vmem,
    )(tok_flat, params["fused_table"], h0[0], c0[0],
      params["w_hh_bf16"], params["w_fc_t"], params["b_fc"])
    return out


def reference_forward(x_tokens, h0, c0, params):
    """Pure-JAX f32 reference mirroring the PyTorch module semantics exactly."""
    emb = jnp.take(params["embedding"], x_tokens, axis=0)   # (S, B, E)
    H = h0.shape[-1]

    def step(carry, x_t):
        h, c = carry
        gates = x_t @ params["w_ih_t"] + h @ params["w_hh_t"] + params["b"]
        i = jax.nn.sigmoid(gates[:, 0 * H:1 * H])
        f = jax.nn.sigmoid(gates[:, 1 * H:2 * H])
        g = jnp.tanh(gates[:, 2 * H:3 * H])
        o = jax.nn.sigmoid(gates[:, 3 * H:4 * H])
        c_new = f * c + i * g
        h_new = o * jnp.tanh(c_new)
        return (h_new, c_new), h_new

    (_, _), outs = jax.lax.scan(step, (h0[0], c0[0]), emb)
    last = outs[-1]
    return (last @ params["w_fc_t"] + params["b_fc"])[None, ...]


def reference_forward_mirror(x_tokens, h0, c0, params):
    """Pure-JAX mirror of the kernel's numerics (bf16 MXU operands on h @ W_hh)."""
    pre = jnp.take(params["fused_table"], x_tokens, axis=0)  # (S, B, 4H)
    whh = params["w_hh_bf16"]
    H = h0.shape[-1]

    def step(carry, p_t):
        h, c = carry
        gates = p_t + jnp.dot(h.astype(jnp.bfloat16), whh,
                              preferred_element_type=jnp.float32)
        i = jax.nn.sigmoid(gates[:, 0 * H:1 * H])
        f = jax.nn.sigmoid(gates[:, 1 * H:2 * H])
        g = jnp.tanh(gates[:, 2 * H:3 * H])
        o = jax.nn.sigmoid(gates[:, 3 * H:4 * H])
        c_new = f * c + i * g
        h_new = o * jnp.tanh(c_new)
        return (h_new, c_new), None

    (h, _), _ = jax.lax.scan(step, (h0[0], c0[0]), pre)
    return (h @ params["w_fc_t"] + params["b_fc"])[None, ...]


def init_params(key, n_input, n_embed, n_hidden, n_output):
    """Deterministic init matching PyTorch shapes, plus weight-only prepped tensors."""
    ks = jax.random.split(key, 7)
    bound = 1.0 / np.sqrt(n_hidden)
    # nn.Embedding: N(0, 1)
    embedding = jax.random.normal(ks[0], (n_input, n_embed), jnp.float32)
    # nn.LSTM weights: U(-1/sqrt(H), 1/sqrt(H)); PyTorch layout (4H, E)/(4H, H)
    w_ih = jax.random.uniform(ks[1], (4 * n_hidden, n_embed), jnp.float32, -bound, bound)
    w_hh = jax.random.uniform(ks[2], (4 * n_hidden, n_hidden), jnp.float32, -bound, bound)
    b_ih = jax.random.uniform(ks[3], (4 * n_hidden,), jnp.float32, -bound, bound)
    b_hh = jax.random.uniform(ks[4], (4 * n_hidden,), jnp.float32, -bound, bound)
    # nn.Linear(n_hidden, n_output)
    fbound = 1.0 / np.sqrt(n_hidden)
    w_fc = jax.random.uniform(ks[5], (n_output, n_hidden), jnp.float32, -fbound, fbound)
    b_fc = jax.random.uniform(ks[6], (n_output,), jnp.float32, -fbound, fbound)

    # --- Weight-only precompute (hoisted out of the forward path) ------------
    # embedding[tok] @ W_ih^T + b_ih + b_hh == (embedding @ W_ih^T + b)[tok]
    fused_table = (jnp.dot(embedding, w_ih.T,
                           precision=lax.Precision.HIGHEST,
                           preferred_element_type=jnp.float32)
                   + b_ih[None, :] + b_hh[None, :])              # (V, 4H)

    return {
        # raw params (PyTorch semantics, used by the f32 reference)
        "embedding": embedding,
        "w_ih_t": w_ih.T,                       # (E, 4H)
        "w_hh_t": w_hh.T,                       # (H, 4H)
        "b": (b_ih + b_hh)[None, :],            # (1, 4H)
        "w_fc_t": w_fc.T,                       # (H, O)
        "b_fc": b_fc[None, :],                  # (1, O)
        # kernel-ready params
        "fused_table": fused_table,             # (V, 4H) f32
        "w_hh_bf16": w_hh.T.astype(jnp.bfloat16),  # (H, 4H) bf16 (single-pass MXU)
    }


if __name__ == "__main__":
    # Small shapes consistent with the module: seq=8, batch=2, vocab=16, embed=32,
    # hidden=32, output=8.
    S, B = 8, 2
    n_input, n_embed, n_hidden, n_output = 16, 32, 32, 8

    key = jax.random.PRNGKey(0)
    kp, kx, kh, kc = jax.random.split(key, 4)
    params = init_params(kp, n_input, n_embed, n_hidden, n_output)

    x_tokens = jax.random.randint(kx, (S, B), 0, n_input, dtype=jnp.int32)   # (seq, batch)
    h0 = jax.random.normal(kh, (1, B, n_hidden), jnp.float32)                # (layers*dirs, B, H)
    c0 = jax.random.normal(kc, (1, B, n_hidden), jnp.float32)

    fwd = jax.jit(pallas_forward)
    out = fwd(x_tokens, h0, c0, params)
    out = jax.block_until_ready(out)

    assert out.shape == (1, B, n_output)

    # Tight check vs. a reference that mirrors the kernel's bf16-MXU recurrence.
    mirror = reference_forward_mirror(x_tokens, h0, c0, params)
    assert jnp.allclose(out, mirror, atol=2e-3, rtol=2e-3), \
        "Pallas output mismatch vs bf16-mirrored reference"

    # Looser sanity check vs. exact f32 PyTorch-semantics reference (bf16 MXU
    # operands on the recurrent matmul bound the expected deviation).
    ref = reference_forward(x_tokens, h0, c0, params)
    assert jnp.allclose(out, ref, atol=3e-2, rtol=3e-2), \
        "Pallas output mismatch vs f32 reference"

    print("KERNEL_OK")
</pallas_src>

<mosaic_0001>
module attributes {stable_mosaic.version = 11 : i64} {
  func.func @lstm_fused_kernel(%arg0: memref<16x1xi32, #tpu.memory_space<vmem>>, %arg1: memref<16x128xf32, #tpu.memory_space<vmem>>, %arg2: memref<2x32xf32, #tpu.memory_space<vmem>>, %arg3: memref<2x32xf32, #tpu.memory_space<vmem>>, %arg4: memref<32x128xbf16, #tpu.memory_space<vmem>>, %arg5: memref<32x8xf32, #tpu.memory_space<vmem>>, %arg6: memref<1x8xf32, #tpu.memory_space<vmem>>, %arg7: memref<1x2x8xf32, #tpu.memory_space<vmem>>) attributes {dimension_semantics = [], scalar_prefetch = 0 : i64, scratch_operands = 0 : i64, tpu.core_type = #tpu.core_type<tc>} {
    %c0 = arith.constant 0 : index
    %c0_0 = arith.constant 0 : index
    %0 = vector.load %arg0[%c0, %c0_0] : memref<16x1xi32, #tpu.memory_space<vmem>>, vector<16x1xi32>
    %1 = tpu.iota {dimensions = array<i32: 1>} : vector<16x16xi32>
    %2 = vector.broadcast %0 : vector<16x1xi32> to vector<16x16xi32>
    %3 = arith.cmpi eq, %2, %1 : vector<16x16xi32>
    %4 = arith.extui %3 : vector<16x16xi1> to vector<16x16xi32>
    %5 = arith.sitofp %4 : vector<16x16xi32> to vector<16x16xf32>
    %c0_1 = arith.constant 0 : index
    %c0_2 = arith.constant 0 : index
    %6 = vector.load %arg1[%c0_1, %c0_2] : memref<16x128xf32, #tpu.memory_space<vmem>>, vector<16x128xf32>
    %cst = arith.constant dense<0.000000e+00> : vector<16x128xf32>
    %7 = tpu.matmul %5, %6, %cst {dimension_numbers = #tpu.dot_dimension_numbers<[1], [0], [0], [1], [0, 0, 1, 1], [], []>} : vector<16x16xf32>, vector<16x128xf32>, vector<16x128xf32> -> vector<16x128xf32>
    %c0_3 = arith.constant 0 : index
    %c0_4 = arith.constant 0 : index
    %8 = vector.load %arg4[%c0_3, %c0_4] : memref<32x128xbf16, #tpu.memory_space<vmem>>, vector<32x128xbf16>
    %9 = tpu.iota {dimensions = array<i32: 1>} : vector<2x128xi32>
    %c64_i32 = arith.constant 64 : i32
    %10 = vector.broadcast %c64_i32 : i32 to vector<2x128xi32>
    %11 = arith.cmpi sge, %9, %10 : vector<2x128xi32>
    %c96_i32 = arith.constant 96 : i32
    %12 = vector.broadcast %c96_i32 : i32 to vector<2x128xi32>
    %13 = arith.cmpi slt, %9, %12 : vector<2x128xi32>
    %14 = arith.andi %11, %13 : vector<2x128xi1>
    %c0_5 = arith.constant 0 : index
    %c0_6 = arith.constant 0 : index
    %15 = vector.load %arg2[%c0_5, %c0_6] : memref<2x32xf32, #tpu.memory_space<vmem>>, vector<2x32xf32>
    %c0_7 = arith.constant 0 : index
    %c0_8 = arith.constant 0 : index
    %16 = vector.load %arg3[%c0_7, %c0_8] : memref<2x32xf32, #tpu.memory_space<vmem>>, vector<2x32xf32>
    %17 = vector.extract_strided_slice %7 {offsets = [0, 0], sizes = [2, 128], strides = [1, 1]} : vector<16x128xf32> to vector<2x128xf32>
    %18 = arith.truncf %15 : vector<2x32xf32> to vector<2x32xbf16>
    %cst_9 = arith.constant dense<0.000000e+00> : vector<2x128xf32>
    %19 = tpu.matmul %18, %8, %cst_9 {dimension_numbers = #tpu.dot_dimension_numbers<[1], [0], [0], [1], [0, 0, 1, 1], [], []>} : vector<2x32xbf16>, vector<32x128xbf16>, vector<2x128xf32> -> vector<2x128xf32>
    %20 = arith.addf %17, %19 : vector<2x128xf32>
    %21 = arith.negf %20 : vector<2x128xf32>
    %22 = math.exp %21 : vector<2x128xf32>
    %cst_10 = arith.constant 1.000000e+00 : f32
    %23 = vector.broadcast %cst_10 : f32 to vector<2x128xf32>
    %24 = arith.addf %23, %22 : vector<2x128xf32>
    %25 = arith.divf %23, %24 : vector<2x128xf32>
    %26 = math.tanh %20 : vector<2x128xf32>
    %27 = arith.select %14, %26, %25 : vector<2x128xi1>, vector<2x128xf32>
    %28 = vector.extract_strided_slice %27 {offsets = [0, 0], sizes = [2, 32], strides = [1, 1]} : vector<2x128xf32> to vector<2x32xf32>
    %29 = vector.extract_strided_slice %27 {offsets = [0, 32], sizes = [2, 32], strides = [1, 1]} : vector<2x128xf32> to vector<2x32xf32>
    %30 = vector.extract_strided_slice %27 {offsets = [0, 64], sizes = [2, 32], strides = [1, 1]} : vector<2x128xf32> to vector<2x32xf32>
    %31 = vector.extract_strided_slice %27 {offsets = [0, 96], sizes = [2, 32], strides = [1, 1]} : vector<2x128xf32> to vector<2x32xf32>
    %32 = arith.mulf %29, %16 : vector<2x32xf32>
    %33 = arith.mulf %28, %30 : vector<2x32xf32>
    %34 = arith.addf %32, %33 : vector<2x32xf32>
    %35 = math.tanh %34 : vector<2x32xf32>
    %36 = arith.mulf %31, %35 : vector<2x32xf32>
    %37 = vector.extract_strided_slice %7 {offsets = [2, 0], sizes = [2, 128], strides = [1, 1]} : vector<16x128xf32> to vector<2x128xf32>
    %38 = arith.truncf %36 : vector<2x32xf32> to vector<2x32xbf16>
    %cst_11 = arith.constant dense<0.000000e+00> : vector<2x128xf32>
    %39 = tpu.matmul %38, %8, %cst_11 {dimension_numbers = #tpu.dot_dimension_numbers<[1], [0], [0], [1], [0, 0, 1, 1], [], []>} : vector<2x32xbf16>, vector<32x128xbf16>, vector<2x128xf32> -> vector<2x128xf32>
    %40 = arith.addf %37, %39 : vector<2x128xf32>
    %41 = arith.negf %40 : vector<2x128xf32>
    %42 = math.exp %41 : vector<2x128xf32>
    %cst_12 = arith.constant 1.000000e+00 : f32
    %43 = vector.broadcast %cst_12 : f32 to vector<2x128xf32>
    %44 = arith.addf %43, %42 : vector<2x128xf32>
    %45 = arith.divf %43, %44 : vector<2x128xf32>
    %46 = math.tanh %40 : vector<2x128xf32>
    %47 = arith.select %14, %46, %45 : vector<2x128xi1>, vector<2x128xf32>
    %48 = vector.extract_strided_slice %47 {offsets = [0, 0], sizes = [2, 32], strides = [1, 1]} : vector<2x128xf32> to vector<2x32xf32>
    %49 = vector.extract_strided_slice %47 {offsets = [0, 32], sizes = [2, 32], strides = [1, 1]} : vector<2x128xf32> to vector<2x32xf32>
    %50 = vector.extract_strided_slice %47 {offsets = [0, 64], sizes = [2, 32], strides = [1, 1]} : vector<2x128xf32> to vector<2x32xf32>
    %51 = vector.extract_strided_slice %47 {offsets = [0, 96], sizes = [2, 32], strides = [1, 1]} : vector<2x128xf32> to vector<2x32xf32>
    %52 = arith.mulf %49, %34 : vector<2x32xf32>
    %53 = arith.mulf %48, %50 : vector<2x32xf32>
    %54 = arith.addf %52, %53 : vector<2x32xf32>
    %55 = math.tanh %54 : vector<2x32xf32>
    %56 = arith.mulf %51, %55 : vector<2x32xf32>
    %57 = vector.extract_strided_slice %7 {offsets = [4, 0], sizes = [2, 128], strides = [1, 1]} : vector<16x128xf32> to vector<2x128xf32>
    %58 = arith.truncf %56 : vector<2x32xf32> to vector<2x32xbf16>
    %cst_13 = arith.constant dense<0.000000e+00> : vector<2x128xf32>
    %59 = tpu.matmul %58, %8, %cst_13 {dimension_numbers = #tpu.dot_dimension_numbers<[1], [0], [0], [1], [0, 0, 1, 1], [], []>} : vector<2x32xbf16>, vector<32x128xbf16>, vector<2x128xf32> -> vector<2x128xf32>
    %60 = arith.addf %57, %59 : vector<2x128xf32>
    %61 = arith.negf %60 : vector<2x128xf32>
    %62 = math.exp %61 : vector<2x128xf32>
    %cst_14 = arith.constant 1.000000e+00 : f32
    %63 = vector.broadcast %cst_14 : f32 to vector<2x128xf32>
    %64 = arith.addf %63, %62 : vector<2x128xf32>
    %65 = arith.divf %63, %64 : vector<2x128xf32>
    %66 = math.tanh %60 : vector<2x128xf32>
    %67 = arith.select %14, %66, %65 : vector<2x128xi1>, vector<2x128xf32>
    %68 = vector.extract_strided_slice %67 {offsets = [0, 0], sizes = [2, 32], strides = [1, 1]} : vector<2x128xf32> to vector<2x32xf32>
    %69 = vector.extract_strided_slice %67 {offsets = [0, 32], sizes = [2, 32], strides = [1, 1]} : vector<2x128xf32> to vector<2x32xf32>
    %70 = vector.extract_strided_slice %67 {offsets = [0, 64], sizes = [2, 32], strides = [1, 1]} : vector<2x128xf32> to vector<2x32xf32>
    %71 = vector.extract_strided_slice %67 {offsets = [0, 96], sizes = [2, 32], strides = [1, 1]} : vector<2x128xf32> to vector<2x32xf32>
    %72 = arith.mulf %69, %54 : vector<2x32xf32>
    %73 = arith.mulf %68, %70 : vector<2x32xf32>
    %74 = arith.addf %72, %73 : vector<2x32xf32>
    %75 = math.tanh %74 : vector<2x32xf32>
    %76 = arith.mulf %71, %75 : vector<2x32xf32>
    %77 = vector.extract_strided_slice %7 {offsets = [6, 0], sizes = [2, 128], strides = [1, 1]} : vector<16x128xf32> to vector<2x128xf32>
    %78 = arith.truncf %76 : vector<2x32xf32> to vector<2x32xbf16>
    %cst_15 = arith.constant dense<0.000000e+00> : vector<2x128xf32>
    %79 = tpu.matmul %78, %8, %cst_15 {dimension_numbers = #tpu.dot_dimension_numbers<[1], [0], [0], [1], [0, 0, 1, 1], [], []>} : vector<2x32xbf16>, vector<32x128xbf16>, vector<2x128xf32> -> vector<2x128xf32>
    %80 = arith.addf %77, %79 : vector<2x128xf32>
    %81 = arith.negf %80 : vector<2x128xf32>
    %82 = math.exp %81 : vector<2x128xf32>
    %cst_16 = arith.constant 1.000000e+00 : f32
    %83 = vector.broadcast %cst_16 : f32 to vector<2x128xf32>
    %84 = arith.addf %83, %82 : vector<2x128xf32>
    %85 = arith.divf %83, %84 : vector<2x128xf32>
    %86 = math.tanh %80 : vector<2x128xf32>
    %87 = arith.select %14, %86, %85 : vector<2x128xi1>, vector<2x128xf32>
    %88 = vector.extract_strided_slice %87 {offsets = [0, 0], sizes = [2, 32], strides = [1, 1]} : vector<2x128xf32> to vector<2x32xf32>
    %89 = vector.extract_strided_slice %87 {offsets = [0, 32], sizes = [2, 32], strides = [1, 1]} : vector<2x128xf32> to vector<2x32xf32>
    %90 = vector.extract_strided_slice %87 {offsets = [0, 64], sizes = [2, 32], strides = [1, 1]} : vector<2x128xf32> to vector<2x32xf32>
    %91 = vector.extract_strided_slice %87 {offsets = [0, 96], sizes = [2, 32], strides = [1, 1]} : vector<2x128xf32> to vector<2x32xf32>
    %92 = arith.mulf %89, %74 : vector<2x32xf32>
    %93 = arith.mulf %88, %90 : vector<2x32xf32>
    %94 = arith.addf %92, %93 : vector<2x32xf32>
    %95 = math.tanh %94 : vector<2x32xf32>
    %96 = arith.mulf %91, %95 : vector<2x32xf32>
    %97 = vector.extract_strided_slice %7 {offsets = [8, 0], sizes = [2, 128], strides = [1, 1]} : vector<16x128xf32> to vector<2x128xf32>
    %98 = arith.truncf %96 : vector<2x32xf32> to vector<2x32xbf16>
    %cst_17 = arith.constant dense<0.000000e+00> : vector<2x128xf32>
    %99 = tpu.matmul %98, %8, %cst_17 {dimension_numbers = #tpu.dot_dimension_numbers<[1], [0], [0], [1], [0, 0, 1, 1], [], []>} : vector<2x32xbf16>, vector<32x128xbf16>, vector<2x128xf32> -> vector<2x128xf32>
    %100 = arith.addf %97, %99 : vector<2x128xf32>
    %101 = arith.negf %100 : vector<2x128xf32>
    %102 = math.exp %101 : vector<2x128xf32>
    %cst_18 = arith.constant 1.000000e+00 : f32
    %103 = vector.broadcast %cst_18 : f32 to vector<2x128xf32>
    %104 = arith.addf %103, %102 : vector<2x128xf32>
    %105 = arith.divf %103, %104 : vector<2x128xf32>
    %106 = math.tanh %100 : vector<2x128xf32>
    %107 = arith.select %14, %106, %105 : vector<2x128xi1>, vector<2x128xf32>
    %108 = vector.extract_strided_slice %107 {offsets = [0, 0], sizes = [2, 32], strides = [1, 1]} : vector<2x128xf32> to vector<2x32xf32>
    %109 = vector.extract_strided_slice %107 {offsets = [0, 32], sizes = [2, 32], strides = [1, 1]} : vector<2x128xf32> to vector<2x32xf32>
    %110 = vector.extract_strided_slice %107 {offsets = [0, 64], sizes = [2, 32], strides = [1, 1]} : vector<2x128xf32> to vector<2x32xf32>
    %111 = vector.extract_strided_slice %107 {offsets = [0, 96], sizes = [2, 32], strides = [1, 1]} : vector<2x128xf32> to vector<2x32xf32>
    %112 = arith.mulf %109, %94 : vector<2x32xf32>
    %113 = arith.mulf %108, %110 : vector<2x32xf32>
    %114 = arith.addf %112, %113 : vector<2x32xf32>
    %115 = math.tanh %114 : vector<2x32xf32>
    %116 = arith.mulf %111, %115 : vector<2x32xf32>
    %117 = vector.extract_strided_slice %7 {offsets = [10, 0], sizes = [2, 128], strides = [1, 1]} : vector<16x128xf32> to vector<2x128xf32>
    %118 = arith.truncf %116 : vector<2x32xf32> to vector<2x32xbf16>
    %cst_19 = arith.constant dense<0.000000e+00> : vector<2x128xf32>
    %119 = tpu.matmul %118, %8, %cst_19 {dimension_numbers = #tpu.dot_dimension_numbers<[1], [0], [0], [1], [0, 0, 1, 1], [], []>} : vector<2x32xbf16>, vector<32x128xbf16>, vector<2x128xf32> -> vector<2x128xf32>
    %120 = arith.addf %117, %119 : vector<2x128xf32>
    %121 = arith.negf %120 : vector<2x128xf32>
    %122 = math.exp %121 : vector<2x128xf32>
    %cst_20 = arith.constant 1.000000e+00 : f32
    %123 = vector.broadcast %cst_20 : f32 to vector<2x128xf32>
    %124 = arith.addf %123, %122 : vector<2x128xf32>
    %125 = arith.divf %123, %124 : vector<2x128xf32>
    %126 = math.tanh %120 : vector<2x128xf32>
    %127 = arith.select %14, %126, %125 : vector<2x128xi1>, vector<2x128xf32>
    %128 = vector.extract_strided_slice %127 {offsets = [0, 0], sizes = [2, 32], strides = [1, 1]} : vector<2x128xf32> to vector<2x32xf32>
    %129 = vector.extract_strided_slice %127 {offsets = [0, 32], sizes = [2, 32], strides = [1, 1]} : vector<2x128xf32> to vector<2x32xf32>
    %130 = vector.extract_strided_slice %127 {offsets = [0, 64], sizes = [2, 32], strides = [1, 1]} : vector<2x128xf32> to vector<2x32xf32>
    %131 = vector.extract_strided_slice %127 {offsets = [0, 96], sizes = [2, 32], strides = [1, 1]} : vector<2x128xf32> to vector<2x32xf32>
    %132 = arith.mulf %129, %114 : vector<2x32xf32>
    %133 = arith.mulf %128, %130 : vector<2x32xf32>
    %134 = arith.addf %132, %133 : vector<2x32xf32>
    %135 = math.tanh %134 : vector<2x32xf32>
    %136 = arith.mulf %131, %135 : vector<2x32xf32>
    %137 = vector.extract_strided_slice %7 {offsets = [12, 0], sizes = [2, 128], strides = [1, 1]} : vector<16x128xf32> to vector<2x128xf32>
    %138 = arith.truncf %136 : vector<2x32xf32> to vector<2x32xbf16>
    %cst_21 = arith.constant dense<0.000000e+00> : vector<2x128xf32>
    %139 = tpu.matmul %138, %8, %cst_21 {dimension_numbers = #tpu.dot_dimension_numbers<[1], [0], [0], [1], [0, 0, 1, 1], [], []>} : vector<2x32xbf16>, vector<32x128xbf16>, vector<2x128xf32> -> vector<2x128xf32>
    %140 = arith.addf %137, %139 : vector<2x128xf32>
    %141 = arith.negf %140 : vector<2x128xf32>
    %142 = math.exp %141 : vector<2x128xf32>
    %cst_22 = arith.constant 1.000000e+00 : f32
    %143 = vector.broadcast %cst_22 : f32 to vector<2x128xf32>
    %144 = arith.addf %143, %142 : vector<2x128xf32>
    %145 = arith.divf %143, %144 : vector<2x128xf32>
    %146 = math.tanh %140 : vector<2x128xf32>
    %147 = arith.select %14, %146, %145 : vector<2x128xi1>, vector<2x128xf32>
    %148 = vector.extract_strided_slice %147 {offsets = [0, 0], sizes = [2, 32], strides = [1, 1]} : vector<2x128xf32> to vector<2x32xf32>
    %149 = vector.extract_strided_slice %147 {offsets = [0, 32], sizes = [2, 32], strides = [1, 1]} : vector<2x128xf32> to vector<2x32xf32>
    %150 = vector.extract_strided_slice %147 {offsets = [0, 64], sizes = [2, 32], strides = [1, 1]} : vector<2x128xf32> to vector<2x32xf32>
    %151 = vector.extract_strided_slice %147 {offsets = [0, 96], sizes = [2, 32], strides = [1, 1]} : vector<2x128xf32> to vector<2x32xf32>
    %152 = arith.mulf %149, %134 : vector<2x32xf32>
    %153 = arith.mulf %148, %150 : vector<2x32xf32>
    %154 = arith.addf %152, %153 : vector<2x32xf32>
    %155 = math.tanh %154 : vector<2x32xf32>
    %156 = arith.mulf %151, %155 : vector<2x32xf32>
    %157 = vector.extract_strided_slice %7 {offsets = [14, 0], sizes = [2, 128], strides = [1, 1]} : vector<16x128xf32> to vector<2x128xf32>
    %158 = arith.truncf %156 : vector<2x32xf32> to vector<2x32xbf16>
    %cst_23 = arith.constant dense<0.000000e+00> : vector<2x128xf32>
    %159 = tpu.matmul %158, %8, %cst_23 {dimension_numbers = #tpu.dot_dimension_numbers<[1], [0], [0], [1], [0, 0, 1, 1], [], []>} : vector<2x32xbf16>, vector<32x128xbf16>, vector<2x128xf32> -> vector<2x128xf32>
    %160 = arith.addf %157, %159 : vector<2x128xf32>
    %161 = arith.negf %160 : vector<2x128xf32>
    %162 = math.exp %161 : vector<2x128xf32>
    %cst_24 = arith.constant 1.000000e+00 : f32
    %163 = vector.broadcast %cst_24 : f32 to vector<2x128xf32>
    %164 = arith.addf %163, %162 : vector<2x128xf32>
    %165 = arith.divf %163, %164 : vector<2x128xf32>
    %166 = math.tanh %160 : vector<2x128xf32>
    %167 = arith.select %14, %166, %165 : vector<2x128xi1>, vector<2x128xf32>
    %168 = vector.extract_strided_slice %167 {offsets = [0, 0], sizes = [2, 32], strides = [1, 1]} : vector<2x128xf32> to vector<2x32xf32>
    %169 = vector.extract_strided_slice %167 {offsets = [0, 32], sizes = [2, 32], strides = [1, 1]} : vector<2x128xf32> to vector<2x32xf32>
    %170 = vector.extract_strided_slice %167 {offsets = [0, 64], sizes = [2, 32], strides = [1, 1]} : vector<2x128xf32> to vector<2x32xf32>
    %171 = vector.extract_strided_slice %167 {offsets = [0, 96], sizes = [2, 32], strides = [1, 1]} : vector<2x128xf32> to vector<2x32xf32>
    %172 = arith.mulf %169, %154 : vector<2x32xf32>
    %173 = arith.mulf %168, %170 : vector<2x32xf32>
    %174 = arith.addf %172, %173 : vector<2x32xf32>
    %175 = math.tanh %174 : vector<2x32xf32>
    %176 = arith.mulf %171, %175 : vector<2x32xf32>
    %c0_25 = arith.constant 0 : index
    %c0_26 = arith.constant 0 : index
    %177 = vector.load %arg5[%c0_25, %c0_26] : memref<32x8xf32, #tpu.memory_space<vmem>>, vector<32x8xf32>
    %cst_27 = arith.constant dense<0.000000e+00> : vector<2x8xf32>
    %178 = tpu.matmul %176, %177, %cst_27 {dimension_numbers = #tpu.dot_dimension_numbers<[1], [0], [0], [1], [0, 0, 1, 1], [], []>} : vector<2x32xf32>, vector<32x8xf32>, vector<2x8xf32> -> vector<2x8xf32>
    %c0_28 = arith.constant 0 : index
    %c0_29 = arith.constant 0 : index
    %179 = vector.load %arg6[%c0_28, %c0_29] : memref<1x8xf32, #tpu.memory_space<vmem>>, vector<1x8xf32>
    %180 = vector.broadcast %179 : vector<1x8xf32> to vector<2x8xf32>
    %181 = arith.addf %178, %180 : vector<2x8xf32>
    %c0_30 = arith.constant 0 : index
    %c0_31 = arith.constant 0 : index
    %c0_32 = arith.constant 0 : index
    %182 = vector.load %arg7[%c0_30, %c0_31, %c0_32] : memref<1x2x8xf32, #tpu.memory_space<vmem>>, vector<1x2x8xf32>
    %183 = vector.shape_cast %182 : vector<1x2x8xf32> to vector<2x8xf32>
    %184 = vector.shape_cast %181 : vector<2x8xf32> to vector<1x2x8xf32>
    tpu.vector_store %arg7[%c0_30, %c0_31, %c0_32], %184 {strides = array<i32>} : memref<1x2x8xf32, #tpu.memory_space<vmem>>, vector<1x2x8xf32>,
    return
  }
}

</mosaic_0001>

<llo_original>
// kernel: pallas_forward.1
$region0: #{pallas_forward.1}
  #allocation0 [shape = 'u32[]', space=smem, size = 0x4, offset = 0x4, fixed_abs, tag = 'smem constant byte address 0x4 - core index']
  #allocation1 [shape = 'u32[72,128]{1,0:T(1,128)}', space=vmem, size = 0x9000, scoped, tag = 'internal scratch']
  %s0 = inlined_call_operand.vmem [shape: s32[16,1], index: 0, kind: input, shape index: {}]
  %s1 = inlined_call_operand.vmem [shape: f32[16,128], index: 1, kind: input, shape index: {}]
  %s2 = inlined_call_operand.vmem [shape: f32[2,32], index: 2, kind: input, shape index: {}]
  %s3 = inlined_call_operand.vmem [shape: f32[2,32], index: 3, kind: input, shape index: {}]
  %s4 = inlined_call_operand.vmem [shape: bf16[32,128], index: 4, kind: input, shape index: {}]
  %s5 = inlined_call_operand.vmem [shape: f32[32,8], index: 5, kind: input, shape index: {}]
  %s6 = inlined_call_operand.vmem [shape: f32[1,8], index: 6, kind: input, shape index: {}]
  %s7 = inlined_call_operand.hbm [shape: f32[1,2,8], index: 7, kind: output, shape index: {}]
  %s8 = sld [smem:[#allocation0]]
  $region38: #{pallas_forward.1} parent=0
    _
  %s10 = ssub.s32 1, %s8
  %s11 = scalar_select 0, %s10, %s8
  $region1: #{pallas_forward.1} parent=0
    #allocation2 [shape = 'u8[1024]{0}', space=vmem, size = 0x400, scoped, tag = 'output window, operand 0, single buffered']
    #allocation3 [shape = 's32[1]{0}', space=sflag, size = 0x4, scoped, tag = 'scoped memory for pallas_forward.1']
    %12 = vsyncpa [#allocation3], 0
    // Predicated region
    $region2: #{pallas_forward.1} parent=1 // pred_check
      _
    $region3: #{pallas_forward.1} parent=1 // pred_check_branch
      %14 = sbr.rel (0) target = $region5
    $region4: #{pallas_forward.1} parent=1 // pred_region
      _
    $region5: #{pallas_forward.1} parent=1 // pred_fallthru
      _
    // Predicated region
    $region6: #{pallas_forward.1} parent=1 // pred_check
      _
    $region7: #{pallas_forward.1} parent=1 // pred_check_branch
      %16 = sbr.rel (0) target = $region9
    $region8: #{pallas_forward.1} parent=1 // pred_region
      _
    $region9: #{pallas_forward.1} parent=1 // pred_fallthru
      _
    // Predicated region
    $region10: #{pallas_forward.1} parent=1 // pred_check
      _
    $region11: #{pallas_forward.1} parent=1 // pred_check_branch
      %18 = sbr.rel (0) target = $region13
    $region12: #{pallas_forward.1} parent=1 // pred_region
      _
    $region13: #{pallas_forward.1} parent=1 // pred_fallthru
      _
    // Predicated region
    $region14: #{pallas_forward.1} parent=1 // pred_check
      _
    $region15: #{pallas_forward.1} parent=1 // pred_check_branch
      %20 = sbr.rel (0) target = $region17
    $region16: #{pallas_forward.1} parent=1 // pred_region
      _
    $region17: #{pallas_forward.1} parent=1 // pred_fallthru
      _
    // Predicated region
    $region18: #{pallas_forward.1} parent=1 // pred_check
      _
    $region19: #{pallas_forward.1} parent=1 // pred_check_branch
      %22 = sbr.rel (0) target = $region21
    $region20: #{pallas_forward.1} parent=1 // pred_region
      _
    $region21: #{pallas_forward.1} parent=1 // pred_fallthru
      _
    // Predicated region
    $region22: #{pallas_forward.1} parent=1 // pred_check
      _
    $region23: #{pallas_forward.1} parent=1 // pred_check_branch
      %24 = sbr.rel (0) target = $region25
    $region24: #{pallas_forward.1} parent=1 // pred_region
      _
    $region25: #{pallas_forward.1} parent=1 // pred_fallthru
      _
    // Predicated region
    $region26: #{pallas_forward.1} parent=1 // pred_check
      _
    $region27: #{pallas_forward.1} parent=1 // pred_check_branch
      %26 = sbr.rel (0) target = $region29
    $region28: #{pallas_forward.1} parent=1 // pred_region
      _
    $region29: #{pallas_forward.1} parent=1 // pred_fallthru
      _
    %v28 = vld [vmem:[%s0] sm:$0xff]
    %v29 = vld [vmem:[%s0 + $0x8] sm:$0xff]
    %v30 = vlaneseq
    %v31 = vand.u32 %v30, 127
    %32 = vset.pattern.permute.xlu0 0
    %33 = vperm.xlu0 %32, %v28
    %v34 = vpop.permute.xlu0 %33
    %35 = vset.pattern.permute.xlu0 0
    %36 = vperm.xlu0 %35, %v29
    %v37 = vpop.permute.xlu0 %36
    %vm38 = vcmp.eq.s32.totalorder %v34, %v31
    %vm39 = vcmp.eq.s32.totalorder %v37, %v31
    %v40 = vsel %vm38, 1, 0
    %v41 = vsel %vm39, 1, 0
    %v42 = vcvt.s32.f32 %v40
    %v43 = vcvt.s32.f32 %v41
    %v44 = vld [vmem:[%s1] sm:$0xff]
    %v45 = vld [vmem:[%s1 + $0x8] sm:$0xff]
    %vm46 = vcmask 130048
    %v48 = vsel %vm46, %v42, 0
    %v51 = vsel %vm46, %v43, 0
    %53 = vmatpush.msra.mxu0 0.0
    %54 = vmatpush.msra.mxu0 0.0
    %55 = vmatpush.msra.mxu0 0.0
    %56 = vmatpush.msra.mxu0 0.0
    %57 = vmatpush.msra.mxu0 0.0
    %58 = vmatpush.msra.mxu0 0.0
    %59 = vmatpush.msra.mxu0 0.0
    %60 = vmatpush.msra.mxu0 0.0
    %61 = vmatpush.msra.mxu0 0.0
    %62 = vmatpush.msra.mxu0 0.0
    %63 = vmatpush.msra.mxu0 0.0
    %64 = vmatpush.msra.mxu0 0.0
    %65 = vmatpush.msra.mxu0 0.0
    %66 = vmatpush.msra.mxu0 0.0
    %67 = vmatpush.msra.mxu0 %v45
    %68 = vmatpush.msra.mxu0 %v44
    %69 = vmatmul.f32.gmra.mxu0 %v48
    %v70 = vpop.f32.mrf.mxu0
    %v71 = vadd.f32 0.0, %v70
    %72 = vmatmul.f32.gmra.mxu0 %v51
    %v73 = vpop.f32.mrf.mxu0
    %v74 = vadd.f32 0.0, %v73
    %75 = vdwg.mxu0
    %v76 = vld [vmem:[%s4] sm:$0xf]
    %v77 = vld [vmem:[%s4 + $0x4] sm:$0xf]
    %v78 = vld [vmem:[%s4 + $0x8] sm:$0xf]
    %v79 = vld [vmem:[%s4 + $0xc] sm:$0xf]
    %vm80 = vcmp.ge.s32.totalorder %v31, 64
    %vm81 = vcmp.lt.s32.totalorder %v31, 96
    %vm82 = vmand %vm80, %vm81
    %v83 = vld [vmem:[%s2] sm:$0x3]
    %v84 = vld [vmem:[%s3] sm:$0x3]
    %v85 = vpack.c.bf16 %v83, %v83
    %v90 = vunpack.c.l.b16 %v76
    %v91 = vunpack.c.l.b16 %v77
    %v92 = vunpack.c.l.b16 %v78
    %v93 = vunpack.c.l.b16 %v79
    %v94 = vpack.c.b16 %v91, %v90
    %v95 = vpack.c.b16 %v93, %v92
    %vm98 = vcmask 261120
    %v100 = vsel %vm98, %v85, 0
    %102 = vmatpush.bf16.msra.mxu0 0
    %103 = vmatpush.bf16.msra.mxu0 0
    %104 = vmatpush.bf16.msra.mxu0 0
    %105 = vmatpush.bf16.msra.mxu0 0
    %106 = vmatpush.bf16.msra.mxu0 0
    %107 = vmatpush.bf16.msra.mxu0 0
    %108 = vmatpush.bf16.msra.mxu0 %v95
    %109 = vmatpush.bf16.msra.mxu0 %v94
    %110 = vmatmul.bf16.gmra.mxu0 %v100
    %v111 = vpop.f32.mrf.mxu0
    %v112 = vadd.f32 0.0, %v111
    %v113 = vpop.f32.mrf.mxu0
    %114 = vdwg.mxu0
    %v115 = vadd.f32 %v71, %v112
    %v116 = vxor.u32 %v115, 2147483648
    %v117 = vmul.f32 %v116, 1.442695
    %v118 = vpow.pop %v117
    %v119 = vadd.f32 %v118, 1.0
    %v120 = vrcp.pop %v119
    %v121 = vmul.f32 %v119, %v120
    %v122 = vsub.f32 1.0, %v121
    %v123 = vmul.f32 %v120, %v122
    %v124 = vadd.f32 %v120, %v123
    %vm125 = vweird.f32 %v119
    %vm126 = vweird.f32 %v120
    %vm127 = vmor %vm125, %vm126
    %v128 = vsel %vm127, %v120, %v124
    %v129 = vand.u32 2147483647, %v119
    %vm130 = vcmp.eq.f32.partialorder %v129, 8.507059e+37
    %v131 = vand.u32 %v119, 2147483648
    %v132 = vor.u32 1.1754944e-38, %v131
    %v133 = vsel %vm130, %v132, %v128
    %v134 = vmul.f32 1.0, %v133
    %v135 = vtanh.pop %v115
    %v136 = vsel %vm82, %v135, %v134
    %138 = vrot.lane.b32.xlu0 %v84, 32
    %v139 = vpop.permute.xlu0 %138
    %v141 = vmul.f32 %v136, %v139
    %143 = vrot.lane.b32.xlu0 %v136, 64
    %v144 = vpop.permute.xlu0 %143
    %v146 = vmul.f32 %v136, %v144
    %148 = vrot.lane.b32.xlu0 %v146, 32
    %v149 = vpop.permute.xlu0 %148
    %v151 = vadd.f32 %v141, %v149
    %v152 = vtanh.pop %v151
    %154 = vrot.lane.b32.xlu0 %v152, 64
    %v155 = vpop.permute.xlu0 %154
    %v157 = vmul.f32 %v136, %v155
    %v158 = vpack.c.bf16 %v157, %v157
    %160 = vrot.lane.b32.xlu0 %v158, 32
    %v161 = vpop.permute.xlu0 %160
    %v163 = vsel %vm98, %v161, 0
    %165 = vmatpush.bf16.msra.mxu0 0
    %166 = vmatpush.bf16.msra.mxu0 0
    %167 = vmatpush.bf16.msra.mxu0 0
    %168 = vmatpush.bf16.msra.mxu0 0
    %169 = vmatpush.bf16.msra.mxu0 0
    %170 = vmatpush.bf16.msra.mxu0 0
    %171 = vmatpush.bf16.msra.mxu0 %v95
    %172 = vmatpush.bf16.msra.mxu0 %v94
    %173 = vmatmul.bf16.gmra.mxu0 %v163
    %v174 = vpop.f32.mrf.mxu0
    %v175 = vadd.f32 0.0, %v174
    %v176 = vpop.f32.mrf.mxu0
    %177 = vdwg.mxu0
    %v179 = vrot.slane %v175, 6
    %v181 = vadd.f32 %v71, %v179
    %v182 = vxor.u32 %v181, 2147483648
    %v183 = vmul.f32 %v182, 1.442695
    %v184 = vpow.pop %v183
    %v185 = vadd.f32 %v184, 1.0
    %v186 = vrcp.pop %v185
    %v187 = vmul.f32 %v185, %v186
    %v188 = vsub.f32 1.0, %v187
    %v189 = vmul.f32 %v186, %v188
    %v190 = vadd.f32 %v186, %v189
    %vm191 = vweird.f32 %v185
    %vm192 = vweird.f32 %v186
    %vm193 = vmor %vm191, %vm192
    %v194 = vsel %vm193, %v186, %v190
    %v195 = vand.u32 2147483647, %v185
    %vm196 = vcmp.eq.f32.partialorder %v195, 8.507059e+37
    %v197 = vand.u32 %v185, 2147483648
    %v198 = vor.u32 1.1754944e-38, %v197
    %v199 = vsel %vm196, %v198, %v194
    %v200 = vmul.f32 1.0, %v199
    %v201 = vtanh.pop %v181
    %v202 = vsel %vm82, %v201, %v200
    %v204 = vrot.slane %v151, 6
    %v206 = vmul.f32 %v202, %v204
    %208 = vrot.lane.b32.xlu0 %v202, 64
    %v209 = vpop.permute.xlu0 %208
    %v211 = vmul.f32 %v202, %v209
    %213 = vrot.lane.b32.xlu0 %v211, 32
    %v214 = vpop.permute.xlu0 %213
    %v216 = vadd.f32 %v206, %v214
    %v217 = vtanh.pop %v216
    %219 = vrot.lane.b32.xlu0 %v217, 64
    %v220 = vpop.permute.xlu0 %219
    %v222 = vmul.f32 %v202, %v220
    %v223 = vpack.c.bf16 %v222, %v222
    %v225 = vrot.slane %v223, 1
    %226 = vrot.lane.b32.xlu0 %v225, 32
    %v227 = vpop.permute.xlu0 %226
    %v229 = vsel %vm98, %v227, 0
    %231 = vmatpush.bf16.msra.mxu0 0
    %232 = vmatpush.bf16.msra.mxu0 0
    %233 = vmatpush.bf16.msra.mxu0 0
    %234 = vmatpush.bf16.msra.mxu0 0
    %235 = vmatpush.bf16.msra.mxu0 0
    %236 = vmatpush.bf16.msra.mxu0 0
    %237 = vmatpush.bf16.msra.mxu0 %v95
    %238 = vmatpush.bf16.msra.mxu0 %v94
    %239 = vmatmul.bf16.gmra.mxu0 %v229
    %v240 = vpop.f32.mrf.mxu0
    %v241 = vadd.f32 0.0, %v240
    %v242 = vpop.f32.mrf.mxu0
    %243 = vdwg.mxu0
    %v245 = vrot.slane %v241, 4
    %v247 = vadd.f32 %v71, %v245
    %v248 = vxor.u32 %v247, 2147483648
    %v249 = vmul.f32 %v248, 1.442695
    %v250 = vpow.pop %v249
    %v251 = vadd.f32 %v250, 1.0
    %v252 = vrcp.pop %v251
    %v253 = vmul.f32 %v251, %v252
    %v254 = vsub.f32 1.0, %v253
    %v255 = vmul.f32 %v252, %v254
    %v256 = vadd.f32 %v252, %v255
    %vm257 = vweird.f32 %v251
    %vm258 = vweird.f32 %v252
    %vm259 = vmor %vm257, %vm258
    %v260 = vsel %vm259, %v252, %v256
    %v261 = vand.u32 2147483647, %v251
    %vm262 = vcmp.eq.f32.partialorder %v261, 8.507059e+37
    %v263 = vand.u32 %v251, 2147483648
    %v264 = vor.u32 1.1754944e-38, %v263
    %v265 = vsel %vm262, %v264, %v260
    %v266 = vmul.f32 1.0, %v265
    %v267 = vtanh.pop %v247
    %v268 = vsel %vm82, %v267, %v266
    %v270 = vrot.slane %v216, 6
    %v272 = vmul.f32 %v268, %v270
    %274 = vrot.lane.b32.xlu0 %v268, 64
    %v275 = vpop.permute.xlu0 %274
    %v277 = vmul.f32 %v268, %v275
    %279 = vrot.lane.b32.xlu0 %v277, 32
    %v280 = vpop.permute.xlu0 %279
    %v282 = vadd.f32 %v272, %v280
    %v283 = vtanh.pop %v282
    %285 = vrot.lane.b32.xlu0 %v283, 64
    %v286 = vpop.permute.xlu0 %285
    %v288 = vmul.f32 %v268, %v286
    %v289 = vpack.c.bf16 %v288, %v288
    %v291 = vrot.slane %v289, 2
    %292 = vrot.lane.b32.xlu0 %v291, 32
    %v293 = vpop.permute.xlu0 %292
    %v295 = vsel %vm98, %v293, 0
    %297 = vmatpush.bf16.msra.mxu0 0
    %298 = vmatpush.bf16.msra.mxu0 0
    %299 = vmatpush.bf16.msra.mxu0 0
    %300 = vmatpush.bf16.msra.mxu0 0
    %301 = vmatpush.bf16.msra.mxu0 0
    %302 = vmatpush.bf16.msra.mxu0 0
    %303 = vmatpush.bf16.msra.mxu0 %v95
    %304 = vmatpush.bf16.msra.mxu0 %v94
    %305 = vmatmul.bf16.gmra.mxu0 %v295
    %v306 = vpop.f32.mrf.mxu0
    %v307 = vadd.f32 0.0, %v306
    %v308 = vpop.f32.mrf.mxu0
    %309 = vdwg.mxu0
    %v311 = vrot.slane %v307, 2
    %v313 = vadd.f32 %v71, %v311
    %v314 = vxor.u32 %v313, 2147483648
    %v315 = vmul.f32 %v314, 1.442695
    %v316 = vpow.pop %v315
    %v317 = vadd.f32 %v316, 1.0
    %v318 = vrcp.pop %v317
    %v319 = vmul.f32 %v317, %v318
    %v320 = vsub.f32 1.0, %v319
    %v321 = vmul.f32 %v318, %v320
    %v322 = vadd.f32 %v318, %v321
    %vm323 = vweird.f32 %v317
    %vm324 = vweird.f32 %v318
    %vm325 = vmor %vm323, %vm324
    %v326 = vsel %vm325, %v318, %v322
    %v327 = vand.u32 2147483647, %v317
    %vm328 = vcmp.eq.f32.partialorder %v327, 8.507059e+37
    %v329 = vand.u32 %v317, 2147483648
    %v330 = vor.u32 1.1754944e-38, %v329
    %v331 = vsel %vm328, %v330, %v326
    %v332 = vmul.f32 1.0, %v331
    %v333 = vtanh.pop %v313
    %v334 = vsel %vm82, %v333, %v332
    %v336 = vrot.slane %v282, 6
    %v338 = vmul.f32 %v334, %v336
    %340 = vrot.lane.b32.xlu0 %v334, 64
    %v341 = vpop.permute.xlu0 %340
    %v343 = vmul.f32 %v334, %v341
    %345 = vrot.lane.b32.xlu0 %v343, 32
    %v346 = vpop.permute.xlu0 %345
    %v348 = vadd.f32 %v338, %v346
    %v349 = vtanh.pop %v348
    %351 = vrot.lane.b32.xlu0 %v349, 64
    %v352 = vpop.permute.xlu0 %351
    %v354 = vmul.f32 %v334, %v352
    %v355 = vpack.c.bf16 %v354, %v354
    %v357 = vrot.slane %v355, 3
    %358 = vrot.lane.b32.xlu0 %v357, 32
    %v359 = vpop.permute.xlu0 %358
    %v361 = vsel %vm98, %v359, 0
    %363 = vmatpush.bf16.msra.mxu0 0
    %364 = vmatpush.bf16.msra.mxu0 0
    %365 = vmatpush.bf16.msra.mxu0 0
    %366 = vmatpush.bf16.msra.mxu0 0
    %367 = vmatpush.bf16.msra.mxu0 0
    %368 = vmatpush.bf16.msra.mxu0 0
    %369 = vmatpush.bf16.msra.mxu0 %v95
    %370 = vmatpush.bf16.msra.mxu0 %v94
    %371 = vmatmul.bf16.gmra.mxu0 %v361
    %v372 = vpop.f32.mrf.mxu0
    %v373 = vadd.f32 0.0, %v372
    %v374 = vpop.f32.mrf.mxu0
    %375 = vdwg.mxu0
    %v376 = vadd.f32 %v74, %v373
    %v377 = vxor.u32 %v376, 2147483648
    %v378 = vmul.f32 %v377, 1.442695
    %v379 = vpow.pop %v378
    %v380 = vadd.f32 %v379, 1.0
    %v381 = vrcp.pop %v380
    %v382 = vmul.f32 %v380, %v381
    %v383 = vsub.f32 1.0, %v382
    %v384 = vmul.f32 %v381, %v383
    %v385 = vadd.f32 %v381, %v384
    %vm386 = vweird.f32 %v380
    %vm387 = vweird.f32 %v381
    %vm388 = vmor %vm386, %vm387
    %v389 = vsel %vm388, %v381, %v385
    %v390 = vand.u32 2147483647, %v380
    %vm391 = vcmp.eq.f32.partialorder %v390, 8.507059e+37
    %v392 = vand.u32 %v380, 2147483648
    %v393 = vor.u32 1.1754944e-38, %v392
    %v394 = vsel %vm391, %v393, %v389
    %v395 = vmul.f32 1.0, %v394
    %v396 = vtanh.pop %v376
    %v397 = vsel %vm82, %v396, %v395
    %v399 = vrot.slane %v348, 6
    %v401 = vmul.f32 %v397, %v399
    %403 = vrot.lane.b32.xlu0 %v397, 64
    %v404 = vpop.permute.xlu0 %403
    %v406 = vmul.f32 %v397, %v404
    %408 = vrot.lane.b32.xlu0 %v406, 32
    %v409 = vpop.permute.xlu0 %408
    %v411 = vadd.f32 %v401, %v409
    %v412 = vtanh.pop %v411
    %414 = vrot.lane.b32.xlu0 %v412, 64
    %v415 = vpop.permute.xlu0 %414
    %v417 = vmul.f32 %v397, %v415
    %v418 = vpack.c.bf16 %v417, %v417
    %420 = vrot.lane.b32.xlu0 %v418, 32
    %v421 = vpop.permute.xlu0 %420
    %v423 = vsel %vm98, %v421, 0
    %425 = vmatpush.bf16.msra.mxu0 0
    %426 = vmatpush.bf16.msra.mxu0 0
    %427 = vmatpush.bf16.msra.mxu0 0
    %428 = vmatpush.bf16.msra.mxu0 0
    %429 = vmatpush.bf16.msra.mxu0 0
    %430 = vmatpush.bf16.msra.mxu0 0
    %431 = vmatpush.bf16.msra.mxu0 %v95
    %432 = vmatpush.bf16.msra.mxu0 %v94
    %433 = vmatmul.bf16.gmra.mxu0 %v423
    %v434 = vpop.f32.mrf.mxu0
    %v435 = vadd.f32 0.0, %v434
    %v436 = vpop.f32.mrf.mxu0
    %437 = vdwg.mxu0
    %v439 = vrot.slane %v435, 6
    %v441 = vadd.f32 %v74, %v439
    %v442 = vxor.u32 %v441, 2147483648
    %v443 = vmul.f32 %v442, 1.442695
    %v444 = vpow.pop %v443
    %v445 = vadd.f32 %v444, 1.0
    %v446 = vrcp.pop %v445
    %v447 = vmul.f32 %v445, %v446
    %v448 = vsub.f32 1.0, %v447
    %v449 = vmul.f32 %v446, %v448
    %v450 = vadd.f32 %v446, %v449
    %vm451 = vweird.f32 %v445
    %vm452 = vweird.f32 %v446
    %vm453 = vmor %vm451, %vm452
    %v454 = vsel %vm453, %v446, %v450
    %v455 = vand.u32 2147483647, %v445
    %vm456 = vcmp.eq.f32.partialorder %v455, 8.507059e+37
    %v457 = vand.u32 %v445, 2147483648
    %v458 = vor.u32 1.1754944e-38, %v457
    %v459 = vsel %vm456, %v458, %v454
    %v460 = vmul.f32 1.0, %v459
    %v461 = vtanh.pop %v441
    %v462 = vsel %vm82, %v461, %v460
    %v464 = vrot.slane %v411, 6
    %v466 = vmul.f32 %v462, %v464
    %468 = vrot.lane.b32.xlu0 %v462, 64
    %v469 = vpop.permute.xlu0 %468
    %v471 = vmul.f32 %v462, %v469
    %473 = vrot.lane.b32.xlu0 %v471, 32
    %v474 = vpop.permute.xlu0 %473
    %v476 = vadd.f32 %v466, %v474
    %v477 = vtanh.pop %v476
    %479 = vrot.lane.b32.xlu0 %v477, 64
    %v480 = vpop.permute.xlu0 %479
    %v482 = vmul.f32 %v462, %v480
    %v483 = vpack.c.bf16 %v482, %v482
    %v485 = vrot.slane %v483, 1
    %486 = vrot.lane.b32.xlu0 %v485, 32
    %v487 = vpop.permute.xlu0 %486
    %v489 = vsel %vm98, %v487, 0
    %491 = vmatpush.bf16.msra.mxu0 0
    %492 = vmatpush.bf16.msra.mxu0 0
    %493 = vmatpush.bf16.msra.mxu0 0
    %494 = vmatpush.bf16.msra.mxu0 0
    %495 = vmatpush.bf16.msra.mxu0 0
    %496 = vmatpush.bf16.msra.mxu0 0
    %497 = vmatpush.bf16.msra.mxu0 %v95
    %498 = vmatpush.bf16.msra.mxu0 %v94
    %499 = vmatmul.bf16.gmra.mxu0 %v489
    %v500 = vpop.f32.mrf.mxu0
    %v501 = vadd.f32 0.0, %v500
    %v502 = vpop.f32.mrf.mxu0
    %503 = vdwg.mxu0
    %v505 = vrot.slane %v501, 4
    %v507 = vadd.f32 %v74, %v505
    %v508 = vxor.u32 %v507, 2147483648
    %v509 = vmul.f32 %v508, 1.442695
    %v510 = vpow.pop %v509
    %v511 = vadd.f32 %v510, 1.0
    %v512 = vrcp.pop %v511
    %v513 = vmul.f32 %v511, %v512
    %v514 = vsub.f32 1.0, %v513
    %v515 = vmul.f32 %v512, %v514
    %v516 = vadd.f32 %v512, %v515
    %vm517 = vweird.f32 %v511
    %vm518 = vweird.f32 %v512
    %vm519 = vmor %vm517, %vm518
    %v520 = vsel %vm519, %v512, %v516
    %v521 = vand.u32 2147483647, %v511
    %vm522 = vcmp.eq.f32.partialorder %v521, 8.507059e+37
    %v523 = vand.u32 %v511, 2147483648
    %v524 = vor.u32 1.1754944e-38, %v523
    %v525 = vsel %vm522, %v524, %v520
    %v526 = vmul.f32 1.0, %v525
    %v527 = vtanh.pop %v507
    %v528 = vsel %vm82, %v527, %v526
    %v530 = vrot.slane %v476, 6
    %v532 = vmul.f32 %v528, %v530
    %534 = vrot.lane.b32.xlu0 %v528, 64
    %v535 = vpop.permute.xlu0 %534
    %v537 = vmul.f32 %v528, %v535
    %539 = vrot.lane.b32.xlu0 %v537, 32
    %v540 = vpop.permute.xlu0 %539
    %v542 = vadd.f32 %v532, %v540
    %v543 = vtanh.pop %v542
    %545 = vrot.lane.b32.xlu0 %v543, 64
    %v546 = vpop.permute.xlu0 %545
    %v548 = vmul.f32 %v528, %v546
    %v549 = vpack.c.bf16 %v548, %v548
    %v551 = vrot.slane %v549, 2
    %552 = vrot.lane.b32.xlu0 %v551, 32
    %v553 = vpop.permute.xlu0 %552
    %v555 = vsel %vm98, %v553, 0
    %557 = vmatpush.bf16.msra.mxu0 0
    %558 = vmatpush.bf16.msra.mxu0 0
    %559 = vmatpush.bf16.msra.mxu0 0
    %560 = vmatpush.bf16.msra.mxu0 0
    %561 = vmatpush.bf16.msra.mxu0 0
    %562 = vmatpush.bf16.msra.mxu0 0
    %563 = vmatpush.bf16.msra.mxu0 %v95
    %564 = vmatpush.bf16.msra.mxu0 %v94
    %565 = vmatmul.bf16.gmra.mxu0 %v555
    %v566 = vpop.f32.mrf.mxu0
    %v567 = vadd.f32 0.0, %v566
    %v568 = vpop.f32.mrf.mxu0
    %569 = vdwg.mxu0
    %v571 = vrot.slane %v567, 2
    %v573 = vadd.f32 %v74, %v571
    %v574 = vxor.u32 %v573, 2147483648
    %v575 = vmul.f32 %v574, 1.442695
    %v576 = vpow.pop %v575
    %v577 = vadd.f32 %v576, 1.0
    %v578 = vrcp.pop %v577
    %v579 = vmul.f32 %v577, %v578
    %v580 = vsub.f32 1.0, %v579
    %v581 = vmul.f32 %v578, %v580
    %v582 = vadd.f32 %v578, %v581
    %vm583 = vweird.f32 %v577
    %vm584 = vweird.f32 %v578
    %vm585 = vmor %vm583, %vm584
    %v586 = vsel %vm585, %v578, %v582
    %v587 = vand.u32 2147483647, %v577
    %vm588 = vcmp.eq.f32.partialorder %v587, 8.507059e+37
    %v589 = vand.u32 %v577, 2147483648
    %v590 = vor.u32 1.1754944e-38, %v589
    %v591 = vsel %vm588, %v590, %v586
    %v592 = vmul.f32 1.0, %v591
    %v593 = vtanh.pop %v573
    %v594 = vsel %vm82, %v593, %v592
    %v596 = vrot.slane %v542, 6
    %v598 = vmul.f32 %v594, %v596
    %600 = vrot.lane.b32.xlu0 %v594, 64
    %v601 = vpop.permute.xlu0 %600
    %v603 = vmul.f32 %v594, %v601
    %605 = vrot.lane.b32.xlu0 %v603, 32
    %v606 = vpop.permute.xlu0 %605
    %v608 = vadd.f32 %v598, %v606
    %v609 = vtanh.pop %v608
    %611 = vrot.lane.b32.xlu0 %v609, 64
    %v612 = vpop.permute.xlu0 %611
    %v614 = vmul.f32 %v594, %v612
    %v615 = vld [vmem:[%s5] sm:$0xff]
    %v616 = vld [vmem:[%s5 + $0x8] sm:$0xff]
    %v617 = vld [vmem:[%s5 + $0x10] sm:$0xff]
    %v618 = vld [vmem:[%s5 + $0x18] sm:$0xff]
    %v619 = vld [vmem:[%s6] sm:$0x1]
    %v621 = vperm.slane %v619, 0
    %v624 = vrot.slane %v614, 6
    %625 = vrot.lane.b32.xlu0 %v624, 32
    %v626 = vpop.permute.xlu0 %625
    %v627 = vsel %vm98, %v626, 0
    %629 = vmatpush.msra.mxu0 0.0
    %630 = vmatpush.msra.mxu0 0.0
    %631 = vmatpush.msra.mxu0 0.0
    %632 = vmatpush.msra.mxu0 0.0
    %633 = vmatpush.msra.mxu0 0.0
    %634 = vmatpush.msra.mxu0 0.0
    %635 = vmatpush.msra.mxu0 0.0
    %636 = vmatpush.msra.mxu0 0.0
    %637 = vmatpush.msra.mxu0 0.0
    %638 = vmatpush.msra.mxu0 0.0
    %639 = vmatpush.msra.mxu0 0.0
    %640 = vmatpush.msra.mxu0 0.0
    %641 = vmatpush.msra.mxu0 %v618
    %642 = vmatpush.msra.mxu0 %v617
    %643 = vmatpush.msra.mxu0 %v616
    %644 = vmatpush.msra.mxu0 %v615
    %645 = vmatmul.f32.gmra.mxu0 %v627
    %v646 = vpop.f32.mrf.mxu0
    %v647 = vadd.f32 %v621, %v646
    %648 = vdwg.mxu0
    %vm649 = vcmask 58368
    %650 = vst.msk [vmem:[#allocation2] sm:$0x3] %vm649, %v647
    // Predicated region
    $region30: #{pallas_forward.1} parent=1 // pred_check
      _
    $region31: #{pallas_forward.1} parent=1 // pred_check_branch
      %652 = sbr.rel (0) target = $region33
    $region32: #{pallas_forward.1} parent=1 // pred_region
      %654 = vsyncadd [#allocation3], 0
      %s656 = sshll.u32 [#allocation2], 4
      %s657 = int_to_ptr.vmem [resolvable:$true] %s656
      %s658 = sshll.u32 %s7, 4
      %s659 = int_to_ptr.hbm [resolvable:$true] %s658
      %661 = dma.vmem_to_hbm [thread:$0]  %s657, 32, %s659, [#allocation3]
    $region33: #{pallas_forward.1} parent=1 // pred_fallthru
      _
    // Predicated region
    $region34: #{pallas_forward.1} parent=1 // pred_check
      _
    $region35: #{pallas_forward.1} parent=1 // pred_check_branch
      %663 = sbr.rel (0) target = $region37
    $region36: #{pallas_forward.1} parent=1 // pred_region
      %665 = dma.done [#allocation3], 32
    $region37: #{pallas_forward.1} parent=1 // pred_fallthru
      _
    %666 = vsyncpa [#allocation3], 1

</llo_original>
